<compile_context>
chip_gen: v7x
topology: tpu7x:2x2x1
jax: 0.10.0
libtpu: 0.0.40
codegen_flags: <defaults>
</compile_context>

<pallas_src>
import functools

import jax
import jax.numpy as jnp
from jax import lax
from jax.experimental import pallas as pl
from jax.experimental.pallas import tpu as pltpu

LANE = 128
SUBL = 8


def _round_up(x, m):
    return ((x + m - 1) // m) * m


def _focal_kernel(x_ref, t_ref, o_ref, acc_ref, *, gamma, total, block_rows,
                  acc_rows, lane, steps, needs_mask, hard_targets):
    c = pl.program_id(0)   # "core" (outer) axis
    j = pl.program_id(1)   # reduction (arbitrary) axis

    @pl.when(j == 0)
    def _():
        acc_ref[...] = jnp.zeros_like(acc_ref)

    # Widen to f32 in-kernel (v5e has no bf16 VPU/EUP; bf16 math would differ).
    x = x_ref[...].astype(jnp.float32)
    t = t_ref[...].astype(jnp.float32)

    # Numerically stable BCE-with-logits (matches
    # F.binary_cross_entropy_with_logits):
    #   bce = max(x, 0) - x*t + log(1 + exp(-|x|))
    e = jnp.exp(-jnp.abs(x))
    bce = jnp.maximum(x, 0.0) - x * t + jnp.log1p(e)

    if hard_targets:
        # pt via sigmoid, reusing e = exp(-|x|): exact for t in {0,1}; saves
        # one EUP exp per element (helps the bf16 / v7x EUP-bound regime).
        p = pl.reciprocal(1.0 + e, approx=False)       # sigmoid(|x|)
        p_x = jnp.where(x >= 0.0, p, 1.0 - p)          # sigmoid(x)
        pt = t * p_x + (1.0 - t) * (1.0 - p_x)
    else:
        pt = jnp.exp(-bce)

    one_m_pt = 1.0 - pt

    # (1 - pt) ** gamma: special-case small integer gamma (default 2.0) so we
    # don't pay exp(gamma * log(.)) on the single EUP slot.
    g = float(gamma)
    if g == int(g) and 0 < int(g) <= 4:
        mod = one_m_pt
        for _ in range(int(g) - 1):
            mod = mod * one_m_pt
    elif g == 0.0:
        mod = jnp.ones_like(one_m_pt)
    else:
        mod = jnp.power(one_m_pt, g)

    # alpha is a uniform scalar in the reference module: folded into the final
    # scale in the wrapper.
    fl = mod * bce

    def reduce_add(v):
        # Fold the (block_rows, 128) block into the small (acc_rows, 128)
        # accumulator: pure vreg-wise VPU adds (leading-axis reduce, no XLU).
        acc_ref[...] += v.reshape(block_rows // acc_rows, acc_rows, lane).sum(axis=0)

    if needs_mask:
        blk = c * steps + j            # logical block index (clamped in index_map)
        row_start = blk * block_rows   # global row offset (int32-safe)
        full_rows = total // lane      # fully valid rows (static)
        rem = total % lane             # valid lanes in the partial row (static)

        @pl.when(row_start + block_rows <= full_rows)
        def _():  # fully-valid tile: fast path, no mask
            reduce_add(fl)

        @pl.when(row_start + block_rows > full_rows)
        def _():  # boundary / dummy tile: mask by global row & lane index
            grow = row_start + lax.broadcasted_iota(jnp.int32, fl.shape, 0)
            col = lax.broadcasted_iota(jnp.int32, fl.shape, 1)
            valid = (grow < full_rows) | ((grow == full_rows) & (col < rem))
            reduce_add(jnp.where(valid, fl, 0.0))
    else:
        reduce_add(fl)

    @pl.when(j == pl.num_programs(1) - 1)
    def _():
        # Reduce the (acc_rows, 128) accumulator to one lane-dense (8, 128)
        # slab per core.
        o_ref[...] = jnp.sum(
            acc_ref[...].reshape(acc_rows // SUBL, SUBL, lane), axis=0
        )


def focal_loss_pallas(inputs, targets, gamma=2.0, alpha=0.25, *,
                      target_block_bytes=1 << 20, buffer_count=3,
                      n_cores=1, core_parallel=False, hard_targets=False):
    """Mean focal loss over all elements of `inputs`/`targets` (Pallas TPU).

    hard_targets=True assumes targets are hard {0,1} labels (exact there) and
    saves one transcendental per element. core_parallel=True requests real
    CORE_PARALLEL codegen for the n_cores axis (use on multi-TensorCore chips,
    e.g. v7x).
    """
    assert inputs.shape == targets.shape
    total = int(inputs.size)
    assert total > 0

    flat_x = inputs.reshape(-1)
    flat_t = targets.reshape(-1)

    # Only pad (one extra copy) when the flat size is not lane-aligned or is
    # tiny; the common detection-head case (multiple of 1024) is copy-free.
    padded = _round_up(total, LANE)
    if padded // LANE < SUBL:
        padded = _round_up(total, LANE * SUBL)
    pad = padded - total
    if pad:
        flat_x = jnp.pad(flat_x, (0, pad))
        flat_t = jnp.pad(flat_t, (0, pad))
    rows = padded // LANE  # >= 8

    itemsize = jnp.dtype(inputs.dtype).itemsize
    # Size the DMA block by BYTES (~1 MiB per input block per buffer), not
    # rows: f32 -> 2048 rows, bf16 -> 4096 rows. Always a multiple of 8.
    tgt_rows = max(SUBL, (int(target_block_bytes) // (LANE * itemsize)) // SUBL * SUBL)
    block_rows = max(SUBL, min(tgt_rows, (rows // SUBL) * SUBL))

    nblocks = pl.cdiv(rows, block_rows)
    n_cores = max(1, min(int(n_cores), nblocks))
    steps = pl.cdiv(nblocks, n_cores)

    # Per-step accumulator granularity: largest of {64,32,16,8} dividing
    # block_rows (block_rows is always a multiple of 8).
    acc_rows = next(d for d in (64, 32, 16, 8) if block_rows % d == 0)

    x2d = flat_x.reshape(rows, LANE)
    t2d = flat_t.reshape(rows, LANE)

    covered = n_cores * steps * block_rows * LANE
    needs_mask = covered != total  # padding / ragged / over-covered blocks

    kernel = functools.partial(
        _focal_kernel,
        gamma=float(gamma),
        total=total,
        block_rows=block_rows,
        acc_rows=acc_rows,
        lane=LANE,
        steps=steps,
        needs_mask=needs_mask,
        hard_targets=bool(hard_targets),
    )

    def in_map(c, j):
        # Clamp so out-of-range steps re-read the last valid block; those
        # steps contribute zero because their global rows are >= total//128.
        return (jnp.minimum(c * steps + j, nblocks - 1), 0)

    if n_cores > 1 and core_parallel:
        sem0 = pltpu.CORE_PARALLEL      # real multi-TensorCore codegen (v7x)
    elif n_cores > 1:
        sem0 = "parallel"
    else:
        sem0 = "arbitrary"

    # Explicit scoped-VMEM limit: enough for 2 inputs x buffer_count blocks
    # plus headroom for elementwise temporaries, never below the 16 MiB v5e
    # default, never above a 28 MiB cap that is safe on v7x's 64 MiB VMEM.
    block_bytes = block_rows * LANE * itemsize
    vmem_need = (2 * max(2, int(buffer_count)) * block_bytes
                 + acc_rows * LANE * 4 + n_cores * SUBL * LANE * 4)
    vmem_limit = int(min(max(4 * vmem_need, 16 << 20), 28 << 20))

    cost = pl.CostEstimate(
        flops=15 * total,
        transcendentals=(2 if hard_targets else 3) * total,
        bytes_accessed=2 * total * itemsize + n_cores * SUBL * LANE * 4,
    )

    def _run(in_spec):
        return pl.pallas_call(
            kernel,
            out_shape=jax.ShapeDtypeStruct((n_cores * SUBL, LANE), jnp.float32),
            grid_spec=pltpu.PrefetchScalarGridSpec(
                num_scalar_prefetch=0,
                grid=(n_cores, steps),
                in_specs=[in_spec, in_spec],
                out_specs=pl.BlockSpec((SUBL, LANE), lambda c, j: (c, 0)),
                scratch_shapes=[pltpu.VMEM((acc_rows, LANE), jnp.float32)],
            ),
            compiler_params=pltpu.CompilerParams(
                dimension_semantics=(sem0, "arbitrary"),
                vmem_limit_bytes=vmem_limit,
            ),
            cost_estimate=cost,
        )(x2d, t2d)

    partials = None
    if int(buffer_count) > 2:
        # Deeper input pipelining (Buffered(3)); guarded so the kernel still
        # runs (with default double-buffering) if the installed Pallas rejects
        # the pipeline_mode kwarg.
        try:
            buffered_spec = pl.BlockSpec(
                (block_rows, LANE), in_map,
                pipeline_mode=pl.Buffered(int(buffer_count)))
            partials = _run(buffered_spec)
        except Exception:
            partials = None
    if partials is None:
        partials = _run(pl.BlockSpec((block_rows, LANE), in_map))

    # Final tiny reduction (n_cores*8*128 f32) + alpha/mean scaling in JAX.
    return (jnp.float32(alpha) * jnp.sum(partials)) / jnp.float32(total)


def focal_loss_ref(inputs, targets, gamma=2.0, alpha=0.25):
    x = inputs.astype(jnp.float32)
    t = targets.astype(jnp.float32)
    bce = jnp.maximum(x, 0.0) - x * t + jnp.log1p(jnp.exp(-jnp.abs(x)))
    pt = jnp.exp(-bce)
    return jnp.mean(alpha * (1.0 - pt) ** gamma * bce)


if __name__ == "__main__":
    key = jax.random.PRNGKey(0)
    k1, k2, k3, k4, k5, k6 = jax.random.split(key, 6)

    # 1) Detection-head-like logits [B, C, H, W], f32, lane-aligned:
    #    copy-free wrapper, unmasked single-block fast path.
    B, C, H, W = 2, 4, 16, 16
    logits = jax.random.normal(k1, (B, C, H, W), dtype=jnp.float32) * 2.0
    targets = jax.random.bernoulli(k2, p=0.25, shape=(B, C, H, W)).astype(jnp.float32)
    loss = jax.block_until_ready(focal_loss_pallas(logits, targets, gamma=2.0, alpha=0.25))
    ref = focal_loss_ref(logits, targets, gamma=2.0, alpha=0.25)
    assert jnp.allclose(loss, ref, rtol=1e-5, atol=1e-6), (loss, ref)

    # 2) Ragged + bf16 inputs: exercises the in-kernel row/col mask path and
    #    the "no wrapper upcast" path.
    shape2 = (2, 3, 7, 5)
    logits2 = (jax.random.normal(k3, shape2, dtype=jnp.float32) * 2.0).astype(jnp.bfloat16)
    targets2 = jax.random.bernoulli(k4, p=0.25, shape=shape2).astype(jnp.bfloat16)
    loss2 = jax.block_until_ready(focal_loss_pallas(logits2, targets2))
    ref2 = focal_loss_ref(logits2, targets2)
    assert jnp.allclose(loss2, ref2, rtol=1e-5, atol=1e-6), (loss2, ref2)

    # 3) Multi-step reduction axis (small block override), single core:
    #    exercises j-axis accumulation + epilogue.
    shape3 = (2, 4, 64, 64)
    logits3 = jax.random.normal(k5, shape3, dtype=jnp.float32) * 2.0
    targets3 = jax.random.bernoulli(k6, p=0.25, shape=shape3).astype(jnp.float32)
    loss3 = jax.block_until_ready(
        focal_loss_pallas(logits3, targets3, target_block_bytes=64 * 1024))
    ref3 = focal_loss_ref(logits3, targets3)
    assert jnp.allclose(loss3, ref3, rtol=1e-5, atol=1e-6), (loss3, ref3)

    # 4) Two-"core" grid split (plain parallel semantics, safe on 1-TC chips;
    #    use core_parallel=True on v7x) + hard-target pt path (one fewer EUP
    #    transcendental per element).
    loss4 = jax.block_until_ready(
        focal_loss_pallas(logits3, targets3, target_block_bytes=64 * 1024,
                          n_cores=2, hard_targets=True))
    assert jnp.allclose(loss4, ref3, rtol=1e-5, atol=1e-6), (loss4, ref3)

    print("KERNEL_OK")
</pallas_src>

<mosaic_0001>
module attributes {stable_mosaic.version = 11 : i64} {
  func.func @_focal_kernel(%arg0: i32, %arg1: i32, %arg2: memref<16x128xf32, #tpu.memory_space<vmem>>, %arg3: memref<16x128xf32, #tpu.memory_space<vmem>>, %arg4: memref<8x128xf32, #tpu.memory_space<vmem>>, %arg5: memref<16x128xf32, #tpu.memory_space<vmem>>) attributes {dimension_semantics = [#tpu.dimension_semantics<arbitrary>, #tpu.dimension_semantics<arbitrary>], iteration_bounds = array<i64: 1, 1>, scalar_prefetch = 0 : i64, scratch_operands = 1 : i64, tpu.core_type = #tpu.core_type<tc>, window_params = [{transform_indices = @transform_0, window_bounds = array<i64: 16, 128>}, {transform_indices = @transform_1, window_bounds = array<i64: 16, 128>}, {transform_indices = @transform_2, window_bounds = array<i64: 8, 128>}]} {
    %c0_i32 = arith.constant 0 : i32
    %0 = arith.cmpi eq, %arg1, %c0_i32 : i32
    %1 = arith.extui %0 : i1 to i32
    %c0_i32_0 = arith.constant 0 : i32
    %2 = arith.cmpi ne, %1, %c0_i32_0 : i32
    scf.if %2 {
      %cst_14 = arith.constant 0.000000e+00 : f32
      %30 = vector.broadcast %cst_14 : f32 to vector<16x128xf32>
      %c0_15 = arith.constant 0 : index
      %c0_16 = arith.constant 0 : index
      %31 = vector.load %arg5[%c0_15, %c0_16] : memref<16x128xf32, #tpu.memory_space<vmem>>, vector<16x128xf32>
      tpu.vector_store %arg5[%c0_15, %c0_16], %30 {strides = array<i32>} : memref<16x128xf32, #tpu.memory_space<vmem>>, vector<16x128xf32>,
    } else {
    }
    %c0 = arith.constant 0 : index
    %c0_1 = arith.constant 0 : index
    %3 = vector.load %arg2[%c0, %c0_1] : memref<16x128xf32, #tpu.memory_space<vmem>>, vector<16x128xf32>
    %c0_2 = arith.constant 0 : index
    %c0_3 = arith.constant 0 : index
    %4 = vector.load %arg3[%c0_2, %c0_3] : memref<16x128xf32, #tpu.memory_space<vmem>>, vector<16x128xf32>
    %5 = math.absf %3 : vector<16x128xf32>
    %cst = arith.constant 0.000000e+00 : f32
    %6 = vector.broadcast %cst : f32 to vector<16x128xf32>
    %7 = arith.subf %6, %5 : vector<16x128xf32>
    %8 = math.exp %7 : vector<16x128xf32>
    %cst_4 = arith.constant 0.000000e+00 : f32
    %9 = vector.broadcast %cst_4 : f32 to vector<16x128xf32>
    %10 = arith.maximumf %3, %9 : vector<16x128xf32>
    %11 = arith.mulf %3, %4 : vector<16x128xf32>
    %12 = arith.subf %10, %11 : vector<16x128xf32>
    %13 = math.log1p %8 : vector<16x128xf32>
    %14 = arith.addf %12, %13 : vector<16x128xf32>
    %cst_5 = arith.constant 0.000000e+00 : f32
    %15 = vector.broadcast %cst_5 : f32 to vector<16x128xf32>
    %16 = arith.subf %15, %14 : vector<16x128xf32>
    %17 = math.exp %16 : vector<16x128xf32>
    %cst_6 = arith.constant 1.000000e+00 : f32
    %18 = vector.broadcast %cst_6 : f32 to vector<16x128xf32>
    %19 = arith.subf %18, %17 : vector<16x128xf32>
    %20 = arith.mulf %19, %19 : vector<16x128xf32>
    %21 = arith.mulf %20, %14 : vector<16x128xf32>
    %c0_7 = arith.constant 0 : index
    %c0_8 = arith.constant 0 : index
    %22 = vector.load %arg5[%c0_7, %c0_8] : memref<16x128xf32, #tpu.memory_space<vmem>>, vector<16x128xf32>
    %23 = vector.shape_cast %21 : vector<16x128xf32> to vector<1x16x128xf32>
    %cst_9 = arith.constant dense<0.000000e+00> : vector<16x128xf32>
    %24 = vector.multi_reduction <add>, %23, %cst_9 [0] : vector<1x16x128xf32> to vector<16x128xf32>
    %25 = arith.addf %22, %24 : vector<16x128xf32>
    %c0_10 = arith.constant 0 : index
    %c0_11 = arith.constant 0 : index
    %26 = vector.load %arg5[%c0_10, %c0_11] : memref<16x128xf32, #tpu.memory_space<vmem>>, vector<16x128xf32>
    tpu.vector_store %arg5[%c0_10, %c0_11], %25 {strides = array<i32>} : memref<16x128xf32, #tpu.memory_space<vmem>>, vector<16x128xf32>,
    %c0_i32_12 = arith.constant 0 : i32
    %27 = arith.cmpi eq, %arg1, %c0_i32_12 : i32
    %28 = arith.extui %27 : i1 to i32
    %c0_i32_13 = arith.constant 0 : i32
    %29 = arith.cmpi ne, %28, %c0_i32_13 : i32
    scf.if %29 {
      %c0_14 = arith.constant 0 : index
      %c0_15 = arith.constant 0 : index
      %30 = vector.load %arg5[%c0_14, %c0_15] : memref<16x128xf32, #tpu.memory_space<vmem>>, vector<16x128xf32>
      %31 = vector.shape_cast %30 : vector<16x128xf32> to vector<2x8x128xf32>
      %cst_16 = arith.constant dense<0.000000e+00> : vector<8x128xf32>
      %32 = vector.multi_reduction <add>, %31, %cst_16 [0] : vector<2x8x128xf32> to vector<8x128xf32>
      %c0_17 = arith.constant 0 : index
      %c0_18 = arith.constant 0 : index
      %33 = vector.load %arg4[%c0_17, %c0_18] : memref<8x128xf32, #tpu.memory_space<vmem>>, vector<8x128xf32>
      tpu.vector_store %arg4[%c0_17, %c0_18], %32 {strides = array<i32>} : memref<8x128xf32, #tpu.memory_space<vmem>>, vector<8x128xf32>,
    } else {
    }
    return
  }
  func.func @transform_0(%arg0: i32, %arg1: i32) -> (i32, i32) {
    %c1_i32 = arith.constant 1 : i32
    %0 = arith.muli %arg0, %c1_i32 : i32
    %1 = arith.addi %0, %arg1 : i32
    %c0_i32 = arith.constant 0 : i32
    %2 = arith.minsi %1, %c0_i32 : i32
    %c0_i32_0 = arith.constant 0 : i32
    %c0_i32_1 = arith.constant 0 : i32
    return %2, %c0_i32_0 : i32, i32
  }
  func.func @transform_1(%arg0: i32, %arg1: i32) -> (i32, i32) {
    %c1_i32 = arith.constant 1 : i32
    %0 = arith.muli %arg0, %c1_i32 : i32
    %1 = arith.addi %0, %arg1 : i32
    %c0_i32 = arith.constant 0 : i32
    %2 = arith.minsi %1, %c0_i32 : i32
    %c0_i32_0 = arith.constant 0 : i32
    %c0_i32_1 = arith.constant 0 : i32
    return %2, %c0_i32_0 : i32, i32
  }
  func.func @transform_2(%arg0: i32, %arg1: i32) -> (i32, i32) {
    %c0_i32 = arith.constant 0 : i32
    %c0_i32_0 = arith.constant 0 : i32
    return %arg0, %c0_i32 : i32, i32
  }
}

</mosaic_0001>

<llo_original>
// kernel: tpu_custom_call.1
$region0: #{tpu_custom_call.1}
  #allocation0 [shape = 'u32[]', space=smem, size = 0x4, offset = 0x4, fixed_abs, tag = 'smem constant byte address 0x4 - core index']
  #allocation1 [shape = 'u32[144,128]{1,0:T(1,128)}', space=vmem, size = 0x12000, scoped, tag = 'internal scratch']
  #allocation2 [shape = 'f32[16,128]{1,0:T(8,128)}', space=vmem, size = 0x2000, scoped, tag = 'scratch operand']
  %s0 = inlined_call_operand.hbm [shape: f32[16,128], index: 0, kind: input, shape index: {}]
  %s1 = inlined_call_operand.hbm [shape: f32[16,128], index: 1, kind: input, shape index: {}]
  %s2 = inlined_call_operand.hbm [shape: f32[8,128], index: 2, kind: output, shape index: {}]
  %s3 = sld [smem:[#allocation0]]
  $region34: #{tpu_custom_call.1} parent=0
    _
  %s5 = ssub.s32 1, %s3
  %s6 = scalar_select 0, %s5, %s3
  $region1: #{tpu_custom_call.1} parent=0
    #allocation3 [shape = 'u8[8192]{0}', space=vmem, size = 0x2000, scoped, tag = 'input window, operand 0, single buffered']
    #allocation4 [shape = 's32[1]{0}', space=sflag, size = 0x4, scoped, tag = 'scoped memory for tpu_custom_call.1']
    #allocation5 [shape = 's32[1]{0}', space=sflag, size = 0x4, scoped, tag = 'scoped memory for tpu_custom_call.1']
    #allocation6 [shape = 'u8[8192]{0}', space=vmem, size = 0x2000, scoped, tag = 'input window, operand 1, single buffered']
    #allocation7 [shape = 's32[1]{0}', space=sflag, size = 0x4, scoped, tag = 'scoped memory for tpu_custom_call.1']
    #allocation8 [shape = 'u8[4096]{0}', space=vmem, size = 0x1000, scoped, tag = 'output window, operand 0, single buffered']
    %7 = vsyncpa [#allocation4], 0
    %8 = vsyncpa [#allocation7], 0
    %9 = vsyncpa [#allocation5], 0
    // Predicated region
    $region2: #{tpu_custom_call.1} parent=1 // pred_check
      _
    $region3: #{tpu_custom_call.1} parent=1 // pred_check_branch
      %11 = sbr.rel (0) target = $region5
    $region4: #{tpu_custom_call.1} parent=1 // pred_region
      %s12 = sadd.s32 0, 0
      %p13 = scmp.lt.s32.totalorder %s12, 0
      %s14 = scalar_select %p13, %s12, 0
      %s15 = smul.u32 2, %s14
      %s17 = ssub.s32 256, 256
      %18 = vsyncadd [#allocation4], %s17
      %s19 = smul.addr %s15, 128
      %s20 = scalar_lea.hbm %s0, %s19
      %s21 = sshll.u32 [#allocation3], 4
      %s22 = int_to_ptr.vmem [resolvable:$true] %s21
      %27 = dma.hbm_to_vmem [thread:$0]  %s20, 256, %s22, [#allocation4], 128, 128, 8
    $region5: #{tpu_custom_call.1} parent=1 // pred_fallthru
      _
    // Predicated region
    $region6: #{tpu_custom_call.1} parent=1 // pred_check
      _
    $region7: #{tpu_custom_call.1} parent=1 // pred_check_branch
      %29 = sbr.rel (0) target = $region9
    $region8: #{tpu_custom_call.1} parent=1 // pred_region
      %s30 = sadd.s32 0, 0
      %p31 = scmp.lt.s32.totalorder %s30, 0
      %s32 = scalar_select %p31, %s30, 0
      %s33 = smul.u32 2, %s32
      %s35 = ssub.s32 256, 256
      %36 = vsyncadd [#allocation7], %s35
      %s37 = smul.addr %s33, 128
      %s38 = scalar_lea.hbm %s1, %s37
      %s39 = sshll.u32 [#allocation6], 4
      %s40 = int_to_ptr.vmem [resolvable:$true] %s39
      %45 = dma.hbm_to_vmem [thread:$0]  %s38, 256, %s40, [#allocation7], 128, 128, 8
    $region9: #{tpu_custom_call.1} parent=1 // pred_fallthru
      _
    // Predicated region
    $region10: #{tpu_custom_call.1} parent=1 // pred_check
      _
    $region11: #{tpu_custom_call.1} parent=1 // pred_check_branch
      %47 = sbr.rel (0) target = $region13
    $region12: #{tpu_custom_call.1} parent=1 // pred_region
      %48 = dma.done [#allocation4], 256
    $region13: #{tpu_custom_call.1} parent=1 // pred_fallthru
      _
    // Predicated region
    $region14: #{tpu_custom_call.1} parent=1 // pred_check
      _
    $region15: #{tpu_custom_call.1} parent=1 // pred_check_branch
      %50 = sbr.rel (0) target = $region17
    $region16: #{tpu_custom_call.1} parent=1 // pred_region
      %51 = dma.done [#allocation7], 256
    $region17: #{tpu_custom_call.1} parent=1 // pred_fallthru
      _
    %s52 = sadd.s32 0, 0
    %p53 = scmp.lt.s32.totalorder %s52, 0
    %s54 = scalar_select %p53, %s52, 0
    %s55 = smul.u32 2, %s54
    %s56 = sadd.s32 0, 0
    %p57 = scmp.lt.s32.totalorder %s56, 0
    %s58 = scalar_select %p57, %s56, 0
    %s59 = smul.u32 2, %s58
    %p60 = scmp.eq.s32.totalorder 0, 0
    // Predicated region
    $region18: #{tpu_custom_call.1} parent=1 // pred_check
      %p61 = pneg %p60
    $region19: #{tpu_custom_call.1} parent=1 // pred_check_branch
      %63 = sbr.rel (%p61) target = $region21
    $region20: #{tpu_custom_call.1} parent=1 // pred_region
      %64 = vst [vmem:[#allocation2] sm:$0xff] 0.0
      %65 = vst [vmem:[#allocation2 + $0x8] sm:$0xff] 0.0
    $region21: #{tpu_custom_call.1} parent=1 // pred_fallthru
      _
    %v66 = vld [vmem:[#allocation3] sm:$0xff]
    %v67 = vld [vmem:[#allocation3 + $0x8] sm:$0xff]
    %v68 = vld [vmem:[#allocation6] sm:$0xff]
    %v69 = vld [vmem:[#allocation6 + $0x8] sm:$0xff]
    %v70 = vand.u32 2147483647, %v66
    %v71 = vand.u32 2147483647, %v67
    %v72 = vsub.f32 0.0, %v70
    %v73 = vsub.f32 0.0, %v71
    %v74 = vmul.f32 %v72, 1.442695
    %v75 = vpow.pop %v74
    %v76 = vmul.f32 %v73, 1.442695
    %v77 = vpow.pop %v76
    %v78 = vmax.f32 %v66, 0.0
    %v79 = vmax.f32 %v67, 0.0
    %v80 = vmul.f32 %v66, %v68
    %v81 = vmul.f32 %v67, %v69
    %v82 = vsub.f32 %v78, %v80
    %v83 = vsub.f32 %v79, %v81
    %v84 = vadd.f32 %v75, 1.0
    %v85 = vlog2.pop %v84
    %v86 = vmul.f32 %v85, 0.6931472
    %v87 = vmul.f32 -0.5, %v75
    %v88 = vadd.f32 %v87, 1.0
    %v89 = vmul.f32 %v88, %v75
    %v90 = vand.u32 2147483647, %v75
    %vm91 = vcmp.lt.f32.partialorder %v90, 0.0004427343
    %v92 = vsel %vm91, %v89, %v86
    %v93 = vadd.f32 %v77, 1.0
    %v94 = vlog2.pop %v93
    %v95 = vmul.f32 %v94, 0.6931472
    %v96 = vmul.f32 -0.5, %v77
    %v97 = vadd.f32 %v96, 1.0
    %v98 = vmul.f32 %v97, %v77
    %v99 = vand.u32 2147483647, %v77
    %vm100 = vcmp.lt.f32.partialorder %v99, 0.0004427343
    %v101 = vsel %vm100, %v98, %v95
    %v102 = vadd.f32 %v82, %v92
    %v103 = vadd.f32 %v83, %v101
    %v104 = vsub.f32 0.0, %v102
    %v105 = vsub.f32 0.0, %v103
    %v106 = vmul.f32 %v104, 1.442695
    %v107 = vpow.pop %v106
    %v108 = vmul.f32 %v105, 1.442695
    %v109 = vpow.pop %v108
    %v110 = vsub.f32 1.0, %v107
    %v111 = vsub.f32 1.0, %v109
    %v112 = vmul.f32 %v110, %v110
    %v113 = vmul.f32 %v111, %v111
    %v114 = vmul.f32 %v112, %v102
    %v115 = vmul.f32 %v113, %v103
    %v116 = vld [vmem:[#allocation2] sm:$0xff]
    %v117 = vld [vmem:[#allocation2 + $0x8] sm:$0xff]
    %v118 = vadd.f32 %v114, 0.0
    %v119 = vadd.f32 %v115, 0.0
    %v120 = vadd.f32 %v116, %v118
    %v121 = vadd.f32 %v117, %v119
    %122 = vst [vmem:[#allocation2] sm:$0xff] %v120
    %123 = vst [vmem:[#allocation2 + $0x8] sm:$0xff] %v121
    // Predicated region
    $region22: #{tpu_custom_call.1} parent=1 // pred_check
      %p124 = pneg %p60
    $region23: #{tpu_custom_call.1} parent=1 // pred_check_branch
      %126 = sbr.rel (%p124) target = $region25
    $region24: #{tpu_custom_call.1} parent=1 // pred_region
      %v127 = vld [vmem:[#allocation2] sm:$0xff]
      %v128 = vld [vmem:[#allocation2 + $0x8] sm:$0xff]
      %v129 = vadd.f32 %v127, %v128
      %130 = vst [vmem:[#allocation8] sm:$0xff] %v129
    $region25: #{tpu_custom_call.1} parent=1 // pred_fallthru
      _
    // Predicated region
    $region26: #{tpu_custom_call.1} parent=1 // pred_check
      _
    $region27: #{tpu_custom_call.1} parent=1 // pred_check_branch
      %132 = sbr.rel (0) target = $region29
    $region28: #{tpu_custom_call.1} parent=1 // pred_region
      %s134 = ssub.s32 128, 128
      %135 = vsyncadd [#allocation5], %s134
      %s137 = sshll.u32 [#allocation8], 4
      %s138 = int_to_ptr.vmem [resolvable:$true] %s137
      %140 = dma.vmem_to_hbm [thread:$0]  %s138, 128, %s2, [#allocation5]
    $region29: #{tpu_custom_call.1} parent=1 // pred_fallthru
      _
    // Predicated region
    $region30: #{tpu_custom_call.1} parent=1 // pred_check
      _
    $region31: #{tpu_custom_call.1} parent=1 // pred_check_branch
      %142 = sbr.rel (0) target = $region33
    $region32: #{tpu_custom_call.1} parent=1 // pred_region
      %143 = dma.done [#allocation5], 128
    $region33: #{tpu_custom_call.1} parent=1 // pred_fallthru
      _
    %144 = vsyncpa [#allocation4], 1
    %145 = vsyncpa [#allocation7], 1
    %146 = vsyncpa [#allocation5], 1

</llo_original>
